<compile_context>
chip_gen: v7x
topology: tpu7x:2x2x1
jax: 0.10.0
libtpu: 0.0.40
codegen_flags: <defaults>
</compile_context>

<pallas_src>
import functools

import jax
import jax.numpy as jnp
from jax.experimental import pallas as pl
from jax.experimental.pallas import tpu as pltpu


# ---------------------------------------------------------------------------
# Kernels
# ---------------------------------------------------------------------------

def _se_fused_kernel(x_ref, w1t_ref, w2t_ref, o_ref, *, hw):
    """Single-pass SE for one batch block.

    x_ref/o_ref: (Bt, C, H*W) native dtype; w1t_ref: (C, Ch); w2t_ref: (Ch, C).
    """
    x = x_ref[...]                                                 # native dtype

    # Squeeze: mean over flattened spatial (lane) axis, accumulated in f32.
    pooled = jnp.sum(x, axis=2, dtype=jnp.float32) * (1.0 / float(hw))  # (Bt, C)

    # Excitation (tiny, f32): Linear(C->Ch) -> ReLU -> Linear(Ch->C) -> sigmoid.
    w1t = w1t_ref[...].astype(jnp.float32)                         # (C, Ch)
    w2t = w2t_ref[...].astype(jnp.float32)                         # (Ch, C)
    hidden = jnp.maximum(
        jnp.dot(pooled, w1t, preferred_element_type=jnp.float32), 0.0)   # (Bt, Ch)
    scale = jax.nn.sigmoid(
        jnp.dot(hidden, w2t, preferred_element_type=jnp.float32))        # (Bt, C)

    # Scale in the native dtype; lean store expression (no f32 block temporary).
    o_ref[...] = x * scale.astype(x.dtype)[:, :, None]


def _se_pool_mlp_kernel(x_ref, w1t_ref, w2t_ref, scale_ref, acc_ref, *, hw):
    """Fallback pass 1 over grid (B, n_hw): accumulate the pooled sum across
    spatial tiles; at the last tile run the excitation MLP and emit the
    per-channel scale as a (1, C, 1) block."""
    h = pl.program_id(1)

    @pl.when(h == 0)
    def _():
        acc_ref[...] = jnp.zeros_like(acc_ref)

    acc_ref[...] += jnp.sum(x_ref[...], axis=2, dtype=jnp.float32)       # (1, C)

    @pl.when(h == pl.num_programs(1) - 1)
    def _():
        pooled = acc_ref[...] * (1.0 / float(hw))                        # (1, C)
        w1t = w1t_ref[...].astype(jnp.float32)
        w2t = w2t_ref[...].astype(jnp.float32)
        hidden = jnp.maximum(
            jnp.dot(pooled, w1t, preferred_element_type=jnp.float32), 0.0)
        s = jax.nn.sigmoid(
            jnp.dot(hidden, w2t, preferred_element_type=jnp.float32))    # (1, C)
        scale_ref[...] = s[:, :, None]                                   # (1, C, 1)


def _se_apply_kernel(x_ref, scale_ref, o_ref):
    """Fallback pass 2: multiply each (1, C, hw_t) tile by its (1, C, 1) scale."""
    x = x_ref[...]
    o_ref[...] = x * scale_ref[...].astype(x.dtype)


# ---------------------------------------------------------------------------
# Tiling / budget selection
# ---------------------------------------------------------------------------

def _chip_params():
    """Per-generation (block budget bytes, vmem_limit_bytes, multi_tensorcore)."""
    try:
        kind = jax.devices()[0].device_kind.lower()
    except Exception:
        kind = ""
    if "v5 lite" in kind or "v5e" in kind or "v5lite" in kind:
        # 16 MiB default scoped VMEM, 1 vector-store slot: small blocks, lift limit.
        return 3 << 20, 32 << 20, False
    if "v7" in kind:
        # 64 MiB physical VMEM, 2 TCs, 3.2 TB/s HBM: mid blocks, headroom under 64.
        return 6 << 20, 48 << 20, True
    if "v5p" in kind:
        return 8 << 20, 64 << 20, True
    if "v6" in kind:
        # Single TC, 128 MiB VMEM, ~1.4 TB/s HBM: go big.
        return 8 << 20, 64 << 20, False
    return 4 << 20, 48 << 20, False


def _pick_batch_tile(B, per_image_bytes, budget_bytes, multi_tc, sublane):
    """Largest divisor of B whose (Bt, C, HW) block fits the budget.  On
    multi-TensorCore chips keep >= 2 grid steps so the 'parallel' batch axis
    can be sharded; mildly prefer sublane-aligned Bt."""
    best_bt, best_score = 1, -1.0
    for bt in range(1, B + 1):
        if B % bt:
            continue
        if bt * per_image_bytes > budget_bytes:
            continue
        if multi_tc and B >= 2 and (B // bt) < 2:
            continue
        score = bt * (1.0 if bt % sublane == 0 else 0.95)
        if score > best_score:
            best_score, best_bt = score, bt
    return best_bt


def _pick_hw_tile(HW, C, itemsize, budget_bytes):
    """Largest lane-aligned (multiple of 128) divisor of HW whose (1, C, hw_t)
    tile fits the budget.  None if no such tile exists."""
    for n in range(1, HW + 1):
        if HW % n:
            continue
        t = HW // n
        if t % 128:
            continue
        if C * t * itemsize <= budget_bytes:
            return t
    return None


# ---------------------------------------------------------------------------
# pallas_call wrappers
# ---------------------------------------------------------------------------

def _se_fused(x2, w1t, w2t, Bt, vmem_limit, w_bytes):
    B, C, HW = x2.shape
    Ch = w1t.shape[1]
    itemsize = x2.dtype.itemsize
    cost = pl.CostEstimate(
        flops=2 * B * C * HW + 4 * B * C * Ch,
        transcendentals=B * C,
        bytes_accessed=2 * B * C * HW * itemsize + w_bytes)
    return pl.pallas_call(
        functools.partial(_se_fused_kernel, hw=HW),
        out_shape=jax.ShapeDtypeStruct((B, C, HW), x2.dtype),
        grid_spec=pltpu.PrefetchScalarGridSpec(
            num_scalar_prefetch=0,
            grid=(B // Bt,),
            in_specs=[
                pl.BlockSpec((Bt, C, HW), lambda b: (b, 0, 0)),
                pl.BlockSpec((C, Ch), lambda b: (0, 0)),   # weights VMEM-resident
                pl.BlockSpec((Ch, C), lambda b: (0, 0)),
            ],
            out_specs=pl.BlockSpec((Bt, C, HW), lambda b: (b, 0, 0)),
        ),
        compiler_params=pltpu.CompilerParams(
            dimension_semantics=("parallel",),
            vmem_limit_bytes=vmem_limit),
        cost_estimate=cost,
    )(x2, w1t, w2t)


def _se_two_pass(x2, w1t, w2t, hw_t, vmem_limit, w_bytes):
    B, C, HW = x2.shape
    Ch = w1t.shape[1]
    itemsize = x2.dtype.itemsize
    n_hw = HW // hw_t

    cost1 = pl.CostEstimate(
        flops=B * C * HW + 4 * B * C * Ch,
        transcendentals=B * C,
        bytes_accessed=B * C * HW * itemsize + w_bytes + B * C * 4)
    scale = pl.pallas_call(
        functools.partial(_se_pool_mlp_kernel, hw=HW),
        out_shape=jax.ShapeDtypeStruct((B, C, 1), jnp.float32),
        grid_spec=pltpu.PrefetchScalarGridSpec(
            num_scalar_prefetch=0,
            grid=(B, n_hw),
            in_specs=[
                pl.BlockSpec((1, C, hw_t), lambda b, h: (b, 0, h)),
                pl.BlockSpec((C, Ch), lambda b, h: (0, 0)),
                pl.BlockSpec((Ch, C), lambda b, h: (0, 0)),
            ],
            out_specs=pl.BlockSpec((1, C, 1), lambda b, h: (b, 0, 0)),
            scratch_shapes=[pltpu.VMEM((1, C), jnp.float32)],
        ),
        compiler_params=pltpu.CompilerParams(
            dimension_semantics=("parallel", "arbitrary"),
            vmem_limit_bytes=vmem_limit),
        cost_estimate=cost1,
    )(x2, w1t, w2t)

    cost2 = pl.CostEstimate(
        flops=B * C * HW,
        transcendentals=0,
        bytes_accessed=2 * B * C * HW * itemsize + B * C * 4)
    return pl.pallas_call(
        _se_apply_kernel,
        out_shape=jax.ShapeDtypeStruct((B, C, HW), x2.dtype),
        grid_spec=pltpu.PrefetchScalarGridSpec(
            num_scalar_prefetch=0,
            grid=(B, n_hw),
            in_specs=[
                pl.BlockSpec((1, C, hw_t), lambda b, h: (b, 0, h)),
                pl.BlockSpec((1, C, 1), lambda b, h: (b, 0, 0)),
            ],
            out_specs=pl.BlockSpec((1, C, hw_t), lambda b, h: (b, 0, h)),
        ),
        compiler_params=pltpu.CompilerParams(
            dimension_semantics=("parallel", "parallel"),
            vmem_limit_bytes=vmem_limit),
        cost_estimate=cost2,
    )(x2, scale)


def _se_forward(x, w1, w2, *, budget_override=None):
    """SELayer forward.  x: (B, C, H, W); w1 = fc1.weight (Ch, C);
    w2 = fc2.weight (C, Ch)."""
    B, C, H, W = x.shape
    HW = H * W
    itemsize = x.dtype.itemsize

    budget, vmem_limit, multi_tc = _chip_params()
    if budget_override is not None:
        budget = int(budget_override)

    x2 = x.reshape(B, C, HW)          # lane-dense: spatial on the lane axis
    w1t = jnp.transpose(w1)           # (C, Ch)
    w2t = jnp.transpose(w2)           # (Ch, C)
    w_bytes = (w1.size + w2.size) * w1.dtype.itemsize

    per_image_bytes = C * HW * itemsize
    sublane = max(8, 32 // itemsize)

    if per_image_bytes <= budget:
        Bt = _pick_batch_tile(B, per_image_bytes, budget, multi_tc, sublane)
        out2 = _se_fused(x2, w1t, w2t, Bt, vmem_limit, w_bytes)
    else:
        hw_t = _pick_hw_tile(HW, C, itemsize, budget)
        if hw_t is None or hw_t >= HW:
            # No clean lane-aligned spatial split; fall back to one image/block.
            out2 = _se_fused(x2, w1t, w2t, 1, vmem_limit, w_bytes)
        else:
            out2 = _se_two_pass(x2, w1t, w2t, hw_t, vmem_limit, w_bytes)

    return out2.reshape(B, C, H, W)


se_pallas = jax.jit(_se_forward)


# ---------------------------------------------------------------------------
# Reference + test
# ---------------------------------------------------------------------------

def se_ref(x, w1, w2):
    """Pure-JAX reference matching the PyTorch SELayer forward."""
    y = jnp.mean(x, axis=(2, 3))                    # (B, C)
    h = jnp.maximum(y @ w1.T, 0.0)                  # (B, Ch)
    s = jax.nn.sigmoid(h @ w2.T)                    # (B, C)
    return x * s[:, :, None, None]


if __name__ == "__main__":
    key = jax.random.PRNGKey(0)
    kx, k1, k2 = jax.random.split(key, 3)

    # channel must be >= reduction (=16) for a non-empty hidden layer.
    B, C, H, W = 2, 32, 16, 16
    reduction = 16
    Ch = C // reduction

    x = jax.random.normal(kx, (B, C, H, W), jnp.float32)
    # nn.Linear weights (no bias): fc1.weight (Ch, C), fc2.weight (C, Ch)
    w1 = jax.random.normal(k1, (Ch, C), jnp.float32) * 0.2
    w2 = jax.random.normal(k2, (C, Ch), jnp.float32) * 0.2

    ref = se_ref(x, w1, w2)

    # 1) Main fused path, f32.
    out = jax.block_until_ready(se_pallas(x, w1, w2))
    assert out.shape == ref.shape == (B, C, H, W)
    err = float(jnp.max(jnp.abs(out - ref)))
    if err > 1e-3:
        raise AssertionError(f"f32 fused path mismatch: max abs err = {err}")

    # 2) bf16 inputs (exercises the native-dtype load/store path).
    xb = x.astype(jnp.bfloat16)
    w1b = w1.astype(jnp.bfloat16)
    w2b = w2.astype(jnp.bfloat16)
    out_b = jax.block_until_ready(se_pallas(xb, w1b, w2b))
    ref_b = se_ref(xb.astype(jnp.float32), w1b.astype(jnp.float32),
                   w2b.astype(jnp.float32))
    err_b = float(jnp.max(jnp.abs(out_b.astype(jnp.float32) - ref_b)))
    if err_b > 5e-2:
        raise AssertionError(f"bf16 fused path mismatch: max abs err = {err_b}")

    # 3) Spatially-tiled two-pass fallback (forced via a tiny block budget).
    se_pallas_small = jax.jit(
        functools.partial(_se_forward, budget_override=16 * 1024))
    out_s = jax.block_until_ready(se_pallas_small(x, w1, w2))
    err_s = float(jnp.max(jnp.abs(out_s - ref)))
    if err_s > 1e-3:
        raise AssertionError(f"fallback path mismatch: max abs err = {err_s}")

    print("KERNEL_OK")
</pallas_src>

<mosaic_0001>
module attributes {stable_mosaic.version = 11 : i64} {
  func.func @_se_fused_kernel(%arg0: i32, %arg1: memref<2x32x256xf32, #tpu.memory_space<vmem>>, %arg2: memref<32x2xf32, #tpu.memory_space<vmem>>, %arg3: memref<2x32xf32, #tpu.memory_space<vmem>>, %arg4: memref<2x32x256xf32, #tpu.memory_space<vmem>>) attributes {dimension_semantics = [#tpu.dimension_semantics<parallel>], iteration_bounds = array<i64: 1>, scalar_prefetch = 0 : i64, scratch_operands = 0 : i64, tpu.core_type = #tpu.core_type<tc>, window_params = [{transform_indices = @transform_0, window_bounds = array<i64: 2, 32, 256>}, {pipeline_mode = #tpu.pipeline_mode<synchronous>, transform_indices = @transform_1, window_bounds = array<i64: 32, 2>}, {pipeline_mode = #tpu.pipeline_mode<synchronous>, transform_indices = @transform_2, window_bounds = array<i64: 2, 32>}, {transform_indices = @transform_3, window_bounds = array<i64: 2, 32, 256>}]} {
    %c0 = arith.constant 0 : index
    %c0_0 = arith.constant 0 : index
    %c0_1 = arith.constant 0 : index
    %0 = vector.load %arg1[%c0, %c0_0, %c0_1] : memref<2x32x256xf32, #tpu.memory_space<vmem>>, vector<2x32x256xf32>
    %cst = arith.constant dense<0.000000e+00> : vector<2x32xf32>
    %1 = vector.multi_reduction <add>, %0, %cst [2] : vector<2x32x256xf32> to vector<2x32xf32>
    %cst_2 = arith.constant 3.906250e-03 : f32
    %2 = vector.broadcast %cst_2 : f32 to vector<2x32xf32>
    %3 = arith.mulf %1, %2 : vector<2x32xf32>
    %c0_3 = arith.constant 0 : index
    %c0_4 = arith.constant 0 : index
    %4 = vector.load %arg2[%c0_3, %c0_4] : memref<32x2xf32, #tpu.memory_space<vmem>>, vector<32x2xf32>
    %c0_5 = arith.constant 0 : index
    %c0_6 = arith.constant 0 : index
    %5 = vector.load %arg3[%c0_5, %c0_6] : memref<2x32xf32, #tpu.memory_space<vmem>>, vector<2x32xf32>
    %cst_7 = arith.constant dense<0.000000e+00> : vector<2x2xf32>
    %6 = tpu.matmul %3, %4, %cst_7 {dimension_numbers = #tpu.dot_dimension_numbers<[1], [0], [0], [1], [0, 0, 1, 1], [], []>} : vector<2x32xf32>, vector<32x2xf32>, vector<2x2xf32> -> vector<2x2xf32>
    %cst_8 = arith.constant 0.000000e+00 : f32
    %7 = vector.broadcast %cst_8 : f32 to vector<2x2xf32>
    %8 = arith.maximumf %6, %7 : vector<2x2xf32>
    %cst_9 = arith.constant dense<0.000000e+00> : vector<2x32xf32>
    %9 = tpu.matmul %8, %5, %cst_9 {dimension_numbers = #tpu.dot_dimension_numbers<[1], [0], [0], [1], [0, 0, 1, 1], [], []>} : vector<2x2xf32>, vector<2x32xf32>, vector<2x32xf32> -> vector<2x32xf32>
    %10 = arith.negf %9 : vector<2x32xf32>
    %11 = math.exp %10 : vector<2x32xf32>
    %cst_10 = arith.constant 1.000000e+00 : f32
    %12 = vector.broadcast %cst_10 : f32 to vector<2x32xf32>
    %13 = arith.addf %12, %11 : vector<2x32xf32>
    %14 = arith.divf %12, %13 : vector<2x32xf32>
    %15 = vector.shape_cast %14 : vector<2x32xf32> to vector<2x32x1xf32>
    %16 = vector.broadcast %15 : vector<2x32x1xf32> to vector<2x32x256xf32>
    %17 = arith.mulf %0, %16 : vector<2x32x256xf32>
    %c0_11 = arith.constant 0 : index
    %c0_12 = arith.constant 0 : index
    %c0_13 = arith.constant 0 : index
    %18 = vector.load %arg4[%c0_11, %c0_12, %c0_13] : memref<2x32x256xf32, #tpu.memory_space<vmem>>, vector<2x32x256xf32>
    tpu.vector_store %arg4[%c0_11, %c0_12, %c0_13], %17 {strides = array<i32>} : memref<2x32x256xf32, #tpu.memory_space<vmem>>, vector<2x32x256xf32>,
    return
  }
  func.func @transform_0(%arg0: i32) -> (i32, i32, i32) {
    %c0_i32 = arith.constant 0 : i32
    %c0_i32_0 = arith.constant 0 : i32
    %c0_i32_1 = arith.constant 0 : i32
    return %arg0, %c0_i32, %c0_i32_0 : i32, i32, i32
  }
  func.func @transform_1(%arg0: i32) -> (i32, i32) {
    %c0_i32 = arith.constant 0 : i32
    %c0_i32_0 = arith.constant 0 : i32
    %c0_i32_1 = arith.constant 0 : i32
    return %c0_i32, %c0_i32_0 : i32, i32
  }
  func.func @transform_2(%arg0: i32) -> (i32, i32) {
    %c0_i32 = arith.constant 0 : i32
    %c0_i32_0 = arith.constant 0 : i32
    %c0_i32_1 = arith.constant 0 : i32
    return %c0_i32, %c0_i32_0 : i32, i32
  }
  func.func @transform_3(%arg0: i32) -> (i32, i32, i32) {
    %c0_i32 = arith.constant 0 : i32
    %c0_i32_0 = arith.constant 0 : i32
    %c0_i32_1 = arith.constant 0 : i32
    return %arg0, %c0_i32, %c0_i32_0 : i32, i32, i32
  }
}

</mosaic_0001>

<llo_original>
// kernel: _se_forward.1
$region0: #{_se_forward.1}
  #allocation0 [shape = 'u32[]', space=smem, size = 0x4, offset = 0x4, fixed_abs, tag = 'smem constant byte address 0x4 - core index']
  #allocation1 [shape = 'u32[144,128]{1,0:T(1,128)}', space=vmem, size = 0x12000, scoped, tag = 'internal scratch']
  %s0 = inlined_call_operand.vmem [shape: f32[2,32,256], index: 0, kind: input, shape index: {}]
  %s1 = inlined_call_operand.vmem [shape: f32[32,2], index: 1, kind: input, shape index: {}]
  %s2 = inlined_call_operand.vmem [shape: f32[2,32], index: 2, kind: input, shape index: {}]
  %s3 = inlined_call_operand.vmem [shape: f32[2,32,256], index: 3, kind: output, shape index: {}]
  %s4 = sld [smem:[#allocation0]]
  $region22: #{_se_forward.1} parent=0
    _
  %s6 = ssub.s32 1, %s4
  %s7 = scalar_select 0, %s6, %s4
  // Predicated region
  $region2: #{_se_forward.1} parent=0 // pred_check
    _
  $region3: #{_se_forward.1} parent=0 // pred_check_branch
    %9 = sbr.rel (0) target = $region5
  $region4: #{_se_forward.1} parent=0 // pred_region
    _
  $region5: #{_se_forward.1} parent=0 // pred_fallthru
    _
  // Predicated region
  $region6: #{_se_forward.1} parent=0 // pred_check
    _
  $region7: #{_se_forward.1} parent=0 // pred_check_branch
    %11 = sbr.rel (0) target = $region9
  $region8: #{_se_forward.1} parent=0 // pred_region
    _
  $region9: #{_se_forward.1} parent=0 // pred_fallthru
    _
  // Predicated region
  $region10: #{_se_forward.1} parent=0 // pred_check
    _
  $region11: #{_se_forward.1} parent=0 // pred_check_branch
    %13 = sbr.rel (0) target = $region13
  $region12: #{_se_forward.1} parent=0 // pred_region
    _
  $region13: #{_se_forward.1} parent=0 // pred_fallthru
    _
  %v14 = vld [vmem:[%s0] sm:$0xff]
  %v15 = vld [vmem:[%s0 + $0x8] sm:$0xff]
  %v16 = vld [vmem:[%s0 + $0x10] sm:$0xff]
  %v17 = vld [vmem:[%s0 + $0x18] sm:$0xff]
  %v18 = vld [vmem:[%s0 + $0x20] sm:$0xff]
  %v19 = vld [vmem:[%s0 + $0x28] sm:$0xff]
  %v20 = vld [vmem:[%s0 + $0x30] sm:$0xff]
  %v21 = vld [vmem:[%s0 + $0x38] sm:$0xff]
  %v22 = vld [vmem:[%s0 + $0x40] sm:$0xff]
  %v23 = vld [vmem:[%s0 + $0x48] sm:$0xff]
  %v24 = vld [vmem:[%s0 + $0x50] sm:$0xff]
  %v25 = vld [vmem:[%s0 + $0x58] sm:$0xff]
  %v26 = vld [vmem:[%s0 + $0x60] sm:$0xff]
  %v27 = vld [vmem:[%s0 + $0x68] sm:$0xff]
  %v28 = vld [vmem:[%s0 + $0x70] sm:$0xff]
  %v29 = vld [vmem:[%s0 + $0x78] sm:$0xff]
  %v30 = vadd.f32 %v14, %v15
  %31 = vadd.xlane.f32.xlu0 %v30
  %v32 = vpop.xlane.xlu0 %31
  %v33 = vadd.f32 %v16, %v17
  %34 = vadd.xlane.f32.xlu0 %v33
  %v35 = vpop.xlane.xlu0 %34
  %v36 = vadd.f32 %v18, %v19
  %37 = vadd.xlane.f32.xlu0 %v36
  %v38 = vpop.xlane.xlu0 %37
  %v39 = vadd.f32 %v20, %v21
  %40 = vadd.xlane.f32.xlu0 %v39
  %v41 = vpop.xlane.xlu0 %40
  %v42 = vadd.f32 %v22, %v23
  %43 = vadd.xlane.f32.xlu0 %v42
  %v44 = vpop.xlane.xlu0 %43
  %v45 = vadd.f32 %v24, %v25
  %46 = vadd.xlane.f32.xlu0 %v45
  %v47 = vpop.xlane.xlu0 %46
  %v48 = vadd.f32 %v26, %v27
  %49 = vadd.xlane.f32.xlu0 %v48
  %v50 = vpop.xlane.xlu0 %49
  %v51 = vadd.f32 %v28, %v29
  %52 = vadd.xlane.f32.xlu0 %v51
  %v53 = vpop.xlane.xlu0 %52
  %v54 = vmul.f32 %v32, 0.00390625
  %v55 = vmul.f32 %v35, 0.00390625
  %v56 = vmul.f32 %v38, 0.00390625
  %v57 = vmul.f32 %v41, 0.00390625
  %v58 = vmul.f32 %v44, 0.00390625
  %v59 = vmul.f32 %v47, 0.00390625
  %v60 = vmul.f32 %v50, 0.00390625
  %v61 = vmul.f32 %v53, 0.00390625
  %v62 = vld [vmem:[%s1] sm:$0xff]
  %v63 = vld [vmem:[%s1 + $0x8] sm:$0xff]
  %v64 = vld [vmem:[%s1 + $0x10] sm:$0xff]
  %v65 = vld [vmem:[%s1 + $0x18] sm:$0xff]
  %v66 = vld [vmem:[%s2] sm:$0x3]
  %v75 = vlaneseq
  %v76 = vand.u32 %v75, 127
  %v77 = vlaneseq
  %v78 = vshrl.u32 %v77, 7
  %v79 = vsub.s32 %v76, %v78
  %v80 = vrot.slane %v54, %v79
  %v81 = vadd.s32 %v76, 4294967288
  %v82 = vlaneseq
  %v83 = vshrl.u32 %v82, 7
  %v84 = vsub.s32 %v81, %v83
  %v85 = vrot.slane %v55, %v84
  %vm86 = vcmask 130112
  %v87 = vsel %vm86, %v85, %v80
  %v88 = vadd.s32 %v76, 4294967280
  %v89 = vlaneseq
  %v90 = vshrl.u32 %v89, 7
  %v91 = vsub.s32 %v88, %v90
  %v92 = vrot.slane %v56, %v91
  %vm93 = vcmask 195712
  %v94 = vsel %vm93, %v92, %v87
  %v95 = vadd.s32 %v76, 4294967272
  %v96 = vlaneseq
  %v97 = vshrl.u32 %v96, 7
  %v98 = vsub.s32 %v95, %v97
  %v99 = vrot.slane %v57, %v98
  %vm100 = vcmask 261312
  %v101 = vsel %vm100, %v99, %v94
  %v102 = vlaneseq
  %v103 = vshrl.u32 %v102, 7
  %v104 = vsub.s32 %v76, %v103
  %v105 = vrot.slane %v58, %v104
  %v106 = vlaneseq
  %v107 = vshrl.u32 %v106, 7
  %v108 = vsub.s32 %v81, %v107
  %v109 = vrot.slane %v59, %v108
  %v110 = vsel %vm86, %v109, %v105
  %v111 = vlaneseq
  %v112 = vshrl.u32 %v111, 7
  %v113 = vsub.s32 %v88, %v112
  %v114 = vrot.slane %v60, %v113
  %v115 = vsel %vm93, %v114, %v110
  %v116 = vlaneseq
  %v117 = vshrl.u32 %v116, 7
  %v118 = vsub.s32 %v95, %v117
  %v119 = vrot.slane %v61, %v118
  %v120 = vsel %vm100, %v119, %v115
  %vm121 = vcmask 1041409
  %v122 = vsel %vm121, %v120, %v101
  %vm123 = vcmask 261120
  %v124 = vsel %vm123, %v122, 0
  %126 = vmatprep.subr.mxu0 0.0
  %127 = vmatpush1.msra.mxu0 %v62
  %128 = vmatprep.subr.mxu0 0.0
  %129 = vmatpush1.msra.mxu0 %v63
  %130 = vmatprep.subr.mxu0 0.0
  %131 = vmatpush1.msra.mxu0 %v64
  %132 = vmatprep.subr.mxu0 0.0
  %133 = vmatpush1.msra.mxu0 %v65
  %134 = vmatprep.subr.mxu0 0.0
  %135 = vmatpush1.msra.mxu0 0.0
  %136 = vmatprep.subr.mxu0 0.0
  %137 = vmatpush1.msra.mxu0 0.0
  %138 = vmatprep.subr.mxu0 0.0
  %139 = vmatpush1.msra.mxu0 0.0
  %140 = vmatprep.subr.mxu0 0.0
  %141 = vmatpush1.msra.mxu0 0.0
  %142 = vmatprep.subr.mxu0 0.0
  %143 = vmatpush1.msra.mxu0 0.0
  %144 = vmatprep.subr.mxu0 0.0
  %145 = vmatpush1.msra.mxu0 0.0
  %146 = vmatprep.subr.mxu0 0.0
  %147 = vmatpush1.msra.mxu0 0.0
  %148 = vmatprep.subr.mxu0 0.0
  %149 = vmatpush1.msra.mxu0 0.0
  %150 = vmatprep.subr.mxu0 0.0
  %151 = vmatpush1.msra.mxu0 0.0
  %152 = vmatprep.subr.mxu0 0.0
  %153 = vmatpush1.msra.mxu0 0.0
  %154 = vmatprep.subr.mxu0 0.0
  %155 = vmatpush1.msra.mxu0 0.0
  %156 = vmatprep.subr.mxu0 0.0
  %157 = vmatpush1.msra.mxu0 0.0
  %158 = vmatprep.subr.mxu0 0.0
  %159 = vmatpush1.msra.mxu0 0.0
  %160 = vmatprep.subr.mxu0 0.0
  %161 = vmatpush1.msra.mxu0 0.0
  %162 = vmatprep.subr.mxu0 0.0
  %163 = vmatpush1.msra.mxu0 0.0
  %164 = vmatprep.subr.mxu0 0.0
  %165 = vmatpush1.msra.mxu0 0.0
  %166 = vmatprep.subr.mxu0 0.0
  %167 = vmatpush1.msra.mxu0 0.0
  %168 = vmatprep.subr.mxu0 0.0
  %169 = vmatpush1.msra.mxu0 0.0
  %170 = vmatprep.subr.mxu0 0.0
  %171 = vmatpush1.msra.mxu0 0.0
  %172 = vmatprep.subr.mxu0 0.0
  %173 = vmatpush1.msra.mxu0 0.0
  %174 = vmatprep.subr.mxu0 0.0
  %175 = vmatpush1.msra.mxu0 0.0
  %176 = vmatprep.subr.mxu0 0.0
  %177 = vmatpush1.msra.mxu0 0.0
  %178 = vmatprep.subr.mxu0 0.0
  %179 = vmatpush1.msra.mxu0 0.0
  %180 = vmatprep.subr.mxu0 0.0
  %181 = vmatpush1.msra.mxu0 0.0
  %182 = vmatprep.subr.mxu0 0.0
  %183 = vmatpush1.msra.mxu0 0.0
  %184 = vmatprep.subr.mxu0 0.0
  %185 = vmatpush1.msra.mxu0 0.0
  %186 = vmatprep.subr.mxu0 0.0
  %187 = vmatpush1.msra.mxu0 0.0
  %188 = vmatprep.subr.mxu0 0.0
  %189 = vmatpush1.msra.mxu0 0.0
  %190 = vmatprep.mubr.f32.mxu0 0.0
  %191 = vmatmul.mubr.f32.gmra.mrb[0].mxu0 %v124
  %v192 = vpop.f32.mrb[0].mxu0
  %v193 = vadd.f32 0.0, %v192
  %v194 = vpop.f32.mrb[0].mxu0
  %195 = vdwg.mxu0
  %v196 = vmax.f32 %v193, 0.0
  %vm197 = vcmask 15360
  %v199 = vsel %vm197, %v196, 0
  %vm201 = vcmask 1041408
  %v203 = vsel %vm201, %v66, 0
  %205 = vmatprep.subr.mxu0 0.0
  %206 = vmatpush1.msra.mxu0 %v203
  %207 = vmatprep.subr.mxu0 0.0
  %208 = vmatpush1.msra.mxu0 0.0
  %209 = vmatprep.subr.mxu0 0.0
  %210 = vmatpush1.msra.mxu0 0.0
  %211 = vmatprep.subr.mxu0 0.0
  %212 = vmatpush1.msra.mxu0 0.0
  %213 = vmatprep.subr.mxu0 0.0
  %214 = vmatpush1.msra.mxu0 0.0
  %215 = vmatprep.subr.mxu0 0.0
  %216 = vmatpush1.msra.mxu0 0.0
  %217 = vmatprep.subr.mxu0 0.0
  %218 = vmatpush1.msra.mxu0 0.0
  %219 = vmatprep.subr.mxu0 0.0
  %220 = vmatpush1.msra.mxu0 0.0
  %221 = vmatprep.subr.mxu0 0.0
  %222 = vmatpush1.msra.mxu0 0.0
  %223 = vmatprep.subr.mxu0 0.0
  %224 = vmatpush1.msra.mxu0 0.0
  %225 = vmatprep.subr.mxu0 0.0
  %226 = vmatpush1.msra.mxu0 0.0
  %227 = vmatprep.subr.mxu0 0.0
  %228 = vmatpush1.msra.mxu0 0.0
  %229 = vmatprep.subr.mxu0 0.0
  %230 = vmatpush1.msra.mxu0 0.0
  %231 = vmatprep.subr.mxu0 0.0
  %232 = vmatpush1.msra.mxu0 0.0
  %233 = vmatprep.subr.mxu0 0.0
  %234 = vmatpush1.msra.mxu0 0.0
  %235 = vmatprep.subr.mxu0 0.0
  %236 = vmatpush1.msra.mxu0 0.0
  %237 = vmatprep.subr.mxu0 0.0
  %238 = vmatpush1.msra.mxu0 0.0
  %239 = vmatprep.subr.mxu0 0.0
  %240 = vmatpush1.msra.mxu0 0.0
  %241 = vmatprep.subr.mxu0 0.0
  %242 = vmatpush1.msra.mxu0 0.0
  %243 = vmatprep.subr.mxu0 0.0
  %244 = vmatpush1.msra.mxu0 0.0
  %245 = vmatprep.subr.mxu0 0.0
  %246 = vmatpush1.msra.mxu0 0.0
  %247 = vmatprep.subr.mxu0 0.0
  %248 = vmatpush1.msra.mxu0 0.0
  %249 = vmatprep.subr.mxu0 0.0
  %250 = vmatpush1.msra.mxu0 0.0
  %251 = vmatprep.subr.mxu0 0.0
  %252 = vmatpush1.msra.mxu0 0.0
  %253 = vmatprep.subr.mxu0 0.0
  %254 = vmatpush1.msra.mxu0 0.0
  %255 = vmatprep.subr.mxu0 0.0
  %256 = vmatpush1.msra.mxu0 0.0
  %257 = vmatprep.subr.mxu0 0.0
  %258 = vmatpush1.msra.mxu0 0.0
  %259 = vmatprep.subr.mxu0 0.0
  %260 = vmatpush1.msra.mxu0 0.0
  %261 = vmatprep.subr.mxu0 0.0
  %262 = vmatpush1.msra.mxu0 0.0
  %263 = vmatprep.subr.mxu0 0.0
  %264 = vmatpush1.msra.mxu0 0.0
  %265 = vmatprep.subr.mxu0 0.0
  %266 = vmatpush1.msra.mxu0 0.0
  %267 = vmatprep.subr.mxu0 0.0
  %268 = vmatpush1.msra.mxu0 0.0
  %269 = vmatprep.mubr.f32.mxu0 0.0
  %270 = vmatmul.mubr.f32.gmra.mrb[0].mxu0 %v199
  %v271 = vpop.f32.mrb[0].mxu0
  %v272 = vadd.f32 0.0, %v271
  %v273 = vpop.f32.mrb[0].mxu0
  %274 = vdwg.mxu0
  %v275 = vxor.u32 %v272, 2147483648
  %v276 = vmul.f32 %v275, 1.442695
  %v277 = vpow.pop %v276
  %v278 = vadd.f32 %v277, 1.0
  %v279 = vrcp.pop %v278
  %v280 = vmul.f32 1.0, %v279
  %v281 = vlaneseq
  %v282 = vshrl.u32 %v281, 7
  %v283 = vsub.s32 0, %v282
  %v284 = vrot.slane %v280, %v283
  %286 = vbcast.lane.b32.xlu0 %v284, 256
  %v287 = vpop.permute.xlu0 %286
  %s289 = sor.u32 256, 8
  %290 = vbcast.lane.b32.xlu0 %v284, %s289
  %v291 = vpop.permute.xlu0 %290
  %s293 = sor.u32 256, 16
  %294 = vbcast.lane.b32.xlu0 %v284, %s293
  %v295 = vpop.permute.xlu0 %294
  %s297 = sor.u32 256, 24
  %298 = vbcast.lane.b32.xlu0 %v284, %s297
  %v299 = vpop.permute.xlu0 %298
  %v300 = vlaneseq
  %v301 = vshrl.u32 %v300, 7
  %v302 = vsub.s32 1, %v301
  %v303 = vrot.slane %v280, %v302
  %305 = vbcast.lane.b32.xlu0 %v303, 256
  %v306 = vpop.permute.xlu0 %305
  %s308 = sor.u32 256, 8
  %309 = vbcast.lane.b32.xlu0 %v303, %s308
  %v310 = vpop.permute.xlu0 %309
  %s312 = sor.u32 256, 16
  %313 = vbcast.lane.b32.xlu0 %v303, %s312
  %v314 = vpop.permute.xlu0 %313
  %s316 = sor.u32 256, 24
  %317 = vbcast.lane.b32.xlu0 %v303, %s316
  %v318 = vpop.permute.xlu0 %317
  %v319 = vmul.f32 %v14, %v287
  %v320 = vmul.f32 %v15, %v287
  %v321 = vmul.f32 %v16, %v291
  %v322 = vmul.f32 %v17, %v291
  %v323 = vmul.f32 %v18, %v295
  %v324 = vmul.f32 %v19, %v295
  %v325 = vmul.f32 %v20, %v299
  %v326 = vmul.f32 %v21, %v299
  %v327 = vmul.f32 %v22, %v306
  %v328 = vmul.f32 %v23, %v306
  %v329 = vmul.f32 %v24, %v310
  %v330 = vmul.f32 %v25, %v310
  %v331 = vmul.f32 %v26, %v314
  %v332 = vmul.f32 %v27, %v314
  %v333 = vmul.f32 %v28, %v318
  %v334 = vmul.f32 %v29, %v318
  %335 = vst [vmem:[%s3] sm:$0xff] %v319
  %336 = vst [vmem:[%s3 + $0x8] sm:$0xff] %v320
  %337 = vst [vmem:[%s3 + $0x10] sm:$0xff] %v321
  %338 = vst [vmem:[%s3 + $0x18] sm:$0xff] %v322
  %339 = vst [vmem:[%s3 + $0x20] sm:$0xff] %v323
  %340 = vst [vmem:[%s3 + $0x28] sm:$0xff] %v324
  %341 = vst [vmem:[%s3 + $0x30] sm:$0xff] %v325
  %342 = vst [vmem:[%s3 + $0x38] sm:$0xff] %v326
  %343 = vst [vmem:[%s3 + $0x40] sm:$0xff] %v327
  %344 = vst [vmem:[%s3 + $0x48] sm:$0xff] %v328
  %345 = vst [vmem:[%s3 + $0x50] sm:$0xff] %v329
  %346 = vst [vmem:[%s3 + $0x58] sm:$0xff] %v330
  %347 = vst [vmem:[%s3 + $0x60] sm:$0xff] %v331
  %348 = vst [vmem:[%s3 + $0x68] sm:$0xff] %v332
  %349 = vst [vmem:[%s3 + $0x70] sm:$0xff] %v333
  %350 = vst [vmem:[%s3 + $0x78] sm:$0xff] %v334
  // Predicated region
  $region14: #{_se_forward.1} parent=0 // pred_check
    _
  $region15: #{_se_forward.1} parent=0 // pred_check_branch
    %352 = sbr.rel (0) target = $region17
  $region16: #{_se_forward.1} parent=0 // pred_region
    _
  $region17: #{_se_forward.1} parent=0 // pred_fallthru
    _
  // Predicated region
  $region18: #{_se_forward.1} parent=0 // pred_check
    _
  $region19: #{_se_forward.1} parent=0 // pred_check_branch
    %354 = sbr.rel (0) target = $region21
  $region20: #{_se_forward.1} parent=0 // pred_region
    _
  $region21: #{_se_forward.1} parent=0 // pred_fallthru
    _

</llo_original>
